<compile_context>
chip_gen: v7x
topology: tpu7x:2x2x1
jax: 0.10.0
libtpu: 0.0.40
codegen_flags: <defaults>
</compile_context>

<pallas_src>
import jax
import jax.numpy as jnp
from jax import lax
from jax.experimental import pallas as pl
from jax.experimental.pallas import tpu as pltpu

LANE = 128
SUBLANE = 8


def _round_up(x, m):
    return ((x + m - 1) // m) * m


def _pad2(x, rows, cols):
    return jnp.pad(x, ((0, rows - x.shape[0]), (0, cols - x.shape[1])))


def _silu_ref(x):
    return x * (1.0 / (1.0 + jnp.exp(-x)))


def _silu_kernel(x):
    # exp and the (approx) reciprocal both run on the EUP slot -> frees VALU.
    return x * pl.reciprocal(1.0 + jnp.exp(-x), approx=True)


def _edge_message_kernel(send_ref, recv_ref, ef_ref, node_up_ref,
                         w1_ref, w2_ref, w3_ref, w4_ref, out_ref):
    """Per edge tile: radial MLP -> gather(sender) -> conv_tp -> scatter_sum(receiver).

    out_ref is the resident [N_p, C_p] message accumulator (constant index map
    across the single 'arbitrary' edge-tile grid axis).
    """
    f32, bf16 = jnp.float32, jnp.bfloat16
    TE = ef_ref.shape[0]
    R = w1_ref.shape[0]
    N_p = node_up_ref.shape[0]

    @pl.when(pl.program_id(0) == 0)
    def _zero():
        out_ref[...] = jnp.zeros_like(out_ref)

    ef = ef_ref[...]                       # [TE, R+1] bf16  ([radial basis | edge_attr])
    radial_in = ef[:, :R]                  # [TE, R]
    eattr = ef[:, R:R + 1].astype(f32)     # [TE, 1]

    # ---- radial MLP (no biases): bf16 MXU operands, f32 accumulation ----
    # NOTE: zero-padded edge rows give silu(0)=0 -> zero tp_w; if biases are
    # ever added, padded edges would corrupt node 0's message.
    h = _silu_kernel(jnp.dot(radial_in, w1_ref[...], preferred_element_type=f32))
    h = _silu_kernel(jnp.dot(h.astype(bf16), w2_ref[...], preferred_element_type=f32))
    h = _silu_kernel(jnp.dot(h.astype(bf16), w3_ref[...], preferred_element_type=f32))
    tp_w = jnp.dot(h.astype(bf16), w4_ref[...], preferred_element_type=f32)  # [TE, C_p]
    tp_w = tp_w * eattr                    # fold l=0 edge attribute into the weights

    # ---- gather node_up[sender] as one one-hot MXU matmul (no per-edge loop) ----
    node_ids = lax.broadcasted_iota(jnp.int32, (TE, N_p), 1)
    send_oh = (node_ids == send_ref[...]).astype(bf16)       # [TE, N_p], exact in bf16
    gath = jnp.dot(send_oh, node_up_ref[...], preferred_element_type=f32)  # [TE, C_p]

    # conv_tp (all 0e irreps): channel-wise weighted product
    mji = gath * tp_w                      # [TE, C_p] f32

    # ---- scatter_sum over receiver: onehot^T @ mji on the MXU, f32 accumulation ----
    recv_oh = (node_ids == recv_ref[...]).astype(f32)         # [TE, N_p]
    out_ref[...] += lax.dot_general(
        recv_oh, mji,
        dimension_numbers=(((0,), (0,)), ((), ())),           # contract the edge axis
        preferred_element_type=f32)


def interaction_block(node_attrs, node_feats, edge_attrs, edge_feats,
                      edge_index, params, avg_num_neighbors, *, edge_tile=256):
    f32, bf16 = jnp.float32, jnp.bfloat16
    N, C = node_feats.shape
    Z = node_attrs.shape[1]
    E, R = edge_feats.shape
    Ct = params["w_lin"].shape[1]
    H = params["w_skip"].shape[2]
    h1, h2, h3 = params["w1"].shape[1], params["w2"].shape[1], params["w3"].shape[1]

    C_p = _round_up(C, LANE)
    N_p = _round_up(N, SUBLANE)
    TE = _round_up(edge_tile, 16)          # bf16 sublane packing; >=256 in production
    E_p = _round_up(E, TE)

    # linear_up hoisted to XLA (removes the step-0 stall); resident bf16 in kernel.
    node_up = jnp.dot(node_feats.astype(bf16), params["w_up"].astype(bf16),
                      preferred_element_type=f32)
    node_up_p = _pad2(node_up, N_p, C_p).astype(bf16)

    # Single streamed edge input: [radial basis | edge_attr], bf16, zero-padded rows.
    ef = jnp.concatenate([edge_feats, edge_attrs], axis=-1).astype(bf16)     # [E, R+1]
    ef_p = jnp.pad(ef, ((0, E_p - E), (0, 0)))
    send = jnp.pad(edge_index[0].astype(jnp.int32), (0, E_p - E)).reshape(E_p, 1)
    recv = jnp.pad(edge_index[1].astype(jnp.int32), (0, E_p - E)).reshape(E_p, 1)

    # Radial weights: hidden dims kept at their natural widths (64); only the
    # output channel dim of w4 is lane-padded.
    w1 = params["w1"].astype(bf16)                       # (R, h1)
    w2 = params["w2"].astype(bf16)                       # (h1, h2)
    w3 = params["w3"].astype(bf16)                       # (h2, h3)
    w4 = _pad2(params["w4"], h3, C_p).astype(bf16)       # (h3, C_p)

    edge_map = lambda i: (i, 0)
    const = lambda i: (0, 0)
    grid_spec = pltpu.PrefetchScalarGridSpec(
        num_scalar_prefetch=0,
        grid=(E_p // TE,),
        in_specs=[
            pl.BlockSpec((TE, 1), edge_map),        # sender indices (per tile)
            pl.BlockSpec((TE, 1), edge_map),        # receiver indices (per tile)
            pl.BlockSpec((TE, R + 1), edge_map),    # [edge_feats | edge_attrs] (bf16)
            pl.BlockSpec((N_p, C_p), const),        # node_up (resident bf16)
            pl.BlockSpec((R, h1), const),           # w1
            pl.BlockSpec((h1, h2), const),          # w2
            pl.BlockSpec((h2, h3), const),          # w3
            pl.BlockSpec((h3, C_p), const),         # w4
        ],
        out_specs=pl.BlockSpec((N_p, C_p), const),  # resident message accumulator
    )

    msg_p = pl.pallas_call(
        _edge_message_kernel,
        out_shape=jax.ShapeDtypeStruct((N_p, C_p), f32),
        grid_spec=grid_spec,
        compiler_params=pltpu.CompilerParams(
            dimension_semantics=("arbitrary",),
            vmem_limit_bytes=48 * 1024 * 1024),     # headroom on v7x's 64 MiB VMEM
    )(send, recv, ef_p, node_up_p, w1, w2, w3, w4)

    msg = msg_p[:N, :C]

    # Finalize hoisted to XLA: linear (with 1/avg_num_neighbors folded in) + skip_tp.
    msg = jnp.dot(msg.astype(bf16),
                  (params["w_lin"] / avg_num_neighbors).astype(bf16),
                  preferred_element_type=f32)                            # [N, Ct]
    xbig = jnp.concatenate([node_attrs[:, z:z + 1] * msg for z in range(Z)], axis=-1)
    w_skip = params["w_skip"].reshape(Z * Ct, H)
    out = jnp.dot(xbig.astype(bf16), w_skip.astype(bf16),
                  preferred_element_type=f32)                             # [N, H]

    # reshape_irreps: hidden irreps = H x 0e  =>  [N, H] -> [N, H, 1]
    return out.reshape(N, H, 1), None


def interaction_reference(node_attrs, node_feats, edge_attrs, edge_feats,
                          edge_index, params, avg_num_neighbors):
    """Pure-JAX reference with the same bf16-operand / f32-accumulate casts."""
    f32, bf16 = jnp.float32, jnp.bfloat16
    dot = lambda a, b: jnp.dot(a.astype(bf16), b.astype(bf16),
                               preferred_element_type=f32)
    N = node_feats.shape[0]
    Z = node_attrs.shape[1]

    node_up = dot(node_feats, params["w_up"])
    h = _silu_ref(dot(edge_feats, params["w1"]))
    h = _silu_ref(dot(h, params["w2"]))
    h = _silu_ref(dot(h, params["w3"]))
    tp_w = dot(h, params["w4"]) * edge_attrs
    mji = node_up[edge_index[0]] * tp_w
    msg = jax.ops.segment_sum(mji, edge_index[1], num_segments=N)
    msg = jnp.dot(msg.astype(bf16),
                  (params["w_lin"] / avg_num_neighbors).astype(bf16),
                  preferred_element_type=f32)
    xbig = jnp.concatenate([node_attrs[:, z:z + 1] * msg for z in range(Z)],
                           axis=-1)
    w_skip = params["w_skip"].reshape(Z * msg.shape[1], -1)
    out = jnp.dot(xbig.astype(bf16), w_skip.astype(bf16),
                  preferred_element_type=f32)
    return out.reshape(N, -1, 1), None


def _init_params(key, R, C, Ct, H, Z, radial_mlp=(64, 64, 64)):
    ks = jax.random.split(key, 8)
    scale = lambda fan_in: 1.0 / jnp.sqrt(jnp.float32(fan_in))
    return {
        "w_up": jax.random.normal(ks[0], (C, C), jnp.float32) * scale(C),
        "w1": jax.random.normal(ks[1], (R, radial_mlp[0]), jnp.float32) * scale(R),
        "w2": jax.random.normal(ks[2], (radial_mlp[0], radial_mlp[1]), jnp.float32) * scale(radial_mlp[0]),
        "w3": jax.random.normal(ks[3], (radial_mlp[1], radial_mlp[2]), jnp.float32) * scale(radial_mlp[1]),
        "w4": jax.random.normal(ks[4], (radial_mlp[2], C), jnp.float32) * scale(radial_mlp[2]),
        "w_lin": jax.random.normal(ks[5], (C, Ct), jnp.float32) * scale(C),
        "w_skip": jax.random.normal(ks[6], (Z, Ct, H), jnp.float32) * scale(Ct * Z),
    }


if __name__ == "__main__":
    key = jax.random.PRNGKey(0)
    k_attr, k_feat, k_eattr, k_efeat, k_s, k_r, k_par = jax.random.split(key, 7)

    N, E = 12, 40         # nodes, edges
    Z = 4                 # node_attrs_irreps: Z x 0e (one-hot element types)
    C = 32                # node_feats_irreps: C x 0e
    R = 8                 # edge_feats_irreps: R x 0e (radial basis)
    Ct = 32               # target_irreps:    Ct x 0e
    H = 32                # hidden_irreps:    H x 0e
    avg_num_neighbors = 3.0

    elem = jax.random.randint(k_attr, (N,), 0, Z)
    node_attrs = jax.nn.one_hot(elem, Z, dtype=jnp.float32)       # [N, Z]
    node_feats = jax.random.normal(k_feat, (N, C), jnp.float32)   # [N, C]
    edge_attrs = jax.random.normal(k_eattr, (E, 1), jnp.float32)  # [E, 1]
    edge_feats = jax.random.normal(k_efeat, (E, R), jnp.float32)  # [E, R]
    sender = jax.random.randint(k_s, (E,), 0, N)
    receiver = jax.random.randint(k_r, (E,), 0, N)
    edge_index = jnp.stack([sender, receiver])                    # [2, E]

    params = _init_params(k_par, R, C, Ct, H, Z)

    out, _ = interaction_block(node_attrs, node_feats, edge_attrs, edge_feats,
                               edge_index, params, avg_num_neighbors,
                               edge_tile=16)   # small tile -> exercises 3 grid steps
    out = jax.block_until_ready(out)
    assert out.shape == (N, H, 1) and out.dtype == jnp.float32

    ref, _ = interaction_reference(node_attrs, node_feats, edge_attrs,
                                   edge_feats, edge_index, params,
                                   avg_num_neighbors)
    err = float(jnp.max(jnp.abs(out - ref)))
    scale = float(jnp.max(jnp.abs(ref))) + 1e-6
    assert err <= 5e-2 * scale, f"kernel/reference mismatch: err={err}, scale={scale}"
    print("KERNEL_OK")
</pallas_src>

<mosaic_0001>
module attributes {stable_mosaic.version = 11 : i64} {
  func.func @_edge_message_kernel(%arg0: i32, %arg1: memref<16x1xi32, #tpu.memory_space<vmem>>, %arg2: memref<16x1xi32, #tpu.memory_space<vmem>>, %arg3: memref<16x9xbf16, #tpu.memory_space<vmem>>, %arg4: memref<16x128xbf16, #tpu.memory_space<vmem>>, %arg5: memref<8x64xbf16, #tpu.memory_space<vmem>>, %arg6: memref<64x64xbf16, #tpu.memory_space<vmem>>, %arg7: memref<64x64xbf16, #tpu.memory_space<vmem>>, %arg8: memref<64x128xbf16, #tpu.memory_space<vmem>>, %arg9: memref<16x128xf32, #tpu.memory_space<vmem>>) attributes {dimension_semantics = [#tpu.dimension_semantics<arbitrary>], iteration_bounds = array<i64: 3>, scalar_prefetch = 0 : i64, scratch_operands = 0 : i64, tpu.core_type = #tpu.core_type<tc>, window_params = [{transform_indices = @transform_0, window_bounds = array<i64: 16, 1>}, {transform_indices = @transform_1, window_bounds = array<i64: 16, 1>}, {transform_indices = @transform_2, window_bounds = array<i64: 16, 9>}, {pipeline_mode = #tpu.pipeline_mode<synchronous>, transform_indices = @transform_3, window_bounds = array<i64: 16, 128>}, {pipeline_mode = #tpu.pipeline_mode<synchronous>, transform_indices = @transform_4, window_bounds = array<i64: 8, 64>}, {pipeline_mode = #tpu.pipeline_mode<synchronous>, transform_indices = @transform_5, window_bounds = array<i64: 64, 64>}, {pipeline_mode = #tpu.pipeline_mode<synchronous>, transform_indices = @transform_6, window_bounds = array<i64: 64, 64>}, {pipeline_mode = #tpu.pipeline_mode<synchronous>, transform_indices = @transform_7, window_bounds = array<i64: 64, 128>}, {pipeline_mode = #tpu.pipeline_mode<synchronous>, transform_indices = @transform_8, window_bounds = array<i64: 16, 128>}]} {
    %c0_i32 = arith.constant 0 : i32
    %0 = arith.cmpi eq, %arg0, %c0_i32 : i32
    %1 = arith.extui %0 : i1 to i32
    %c0_i32_0 = arith.constant 0 : i32
    %2 = arith.cmpi ne, %1, %c0_i32_0 : i32
    scf.if %2 {
      %cst_31 = arith.constant 0.000000e+00 : f32
      %60 = vector.broadcast %cst_31 : f32 to vector<16x128xf32>
      %c0_32 = arith.constant 0 : index
      %c0_33 = arith.constant 0 : index
      %61 = vector.load %arg9[%c0_32, %c0_33] : memref<16x128xf32, #tpu.memory_space<vmem>>, vector<16x128xf32>
      tpu.vector_store %arg9[%c0_32, %c0_33], %60 {strides = array<i32>} : memref<16x128xf32, #tpu.memory_space<vmem>>, vector<16x128xf32>,
    } else {
    }
    %c0 = arith.constant 0 : index
    %c0_1 = arith.constant 0 : index
    %3 = vector.load %arg3[%c0, %c0_1] : memref<16x9xbf16, #tpu.memory_space<vmem>>, vector<16x9xbf16>
    %4 = vector.extract_strided_slice %3 {offsets = [0, 0], sizes = [16, 8], strides = [1, 1]} : vector<16x9xbf16> to vector<16x8xbf16>
    %5 = vector.extract_strided_slice %3 {offsets = [0, 8], sizes = [16, 1], strides = [1, 1]} : vector<16x9xbf16> to vector<16x1xbf16>
    %6 = arith.extf %5 : vector<16x1xbf16> to vector<16x1xf32>
    %c0_2 = arith.constant 0 : index
    %c0_3 = arith.constant 0 : index
    %7 = vector.load %arg5[%c0_2, %c0_3] : memref<8x64xbf16, #tpu.memory_space<vmem>>, vector<8x64xbf16>
    %cst = arith.constant dense<0.000000e+00> : vector<16x64xf32>
    %8 = tpu.matmul %4, %7, %cst {dimension_numbers = #tpu.dot_dimension_numbers<[1], [0], [0], [1], [0, 0, 1, 1], [], []>} : vector<16x8xbf16>, vector<8x64xbf16>, vector<16x64xf32> -> vector<16x64xf32>
    %cst_4 = arith.constant 0.000000e+00 : f32
    %9 = vector.broadcast %cst_4 : f32 to vector<16x64xf32>
    %10 = arith.subf %9, %8 : vector<16x64xf32>
    %11 = math.exp %10 : vector<16x64xf32>
    %cst_5 = arith.constant 1.000000e+00 : f32
    %12 = vector.broadcast %cst_5 : f32 to vector<16x64xf32>
    %13 = arith.addf %12, %11 : vector<16x64xf32>
    %14 = tpu.reciprocal %13 {approx = true} : vector<16x64xf32> -> vector<16x64xf32>
    %15 = arith.mulf %8, %14 : vector<16x64xf32>
    %16 = arith.truncf %15 : vector<16x64xf32> to vector<16x64xbf16>
    %c0_6 = arith.constant 0 : index
    %c0_7 = arith.constant 0 : index
    %17 = vector.load %arg6[%c0_6, %c0_7] : memref<64x64xbf16, #tpu.memory_space<vmem>>, vector<64x64xbf16>
    %cst_8 = arith.constant dense<0.000000e+00> : vector<16x64xf32>
    %18 = tpu.matmul %16, %17, %cst_8 {dimension_numbers = #tpu.dot_dimension_numbers<[1], [0], [0], [1], [0, 0, 1, 1], [], []>} : vector<16x64xbf16>, vector<64x64xbf16>, vector<16x64xf32> -> vector<16x64xf32>
    %cst_9 = arith.constant 0.000000e+00 : f32
    %19 = vector.broadcast %cst_9 : f32 to vector<16x64xf32>
    %20 = arith.subf %19, %18 : vector<16x64xf32>
    %21 = math.exp %20 : vector<16x64xf32>
    %cst_10 = arith.constant 1.000000e+00 : f32
    %22 = vector.broadcast %cst_10 : f32 to vector<16x64xf32>
    %23 = arith.addf %22, %21 : vector<16x64xf32>
    %24 = tpu.reciprocal %23 {approx = true} : vector<16x64xf32> -> vector<16x64xf32>
    %25 = arith.mulf %18, %24 : vector<16x64xf32>
    %26 = arith.truncf %25 : vector<16x64xf32> to vector<16x64xbf16>
    %c0_11 = arith.constant 0 : index
    %c0_12 = arith.constant 0 : index
    %27 = vector.load %arg7[%c0_11, %c0_12] : memref<64x64xbf16, #tpu.memory_space<vmem>>, vector<64x64xbf16>
    %cst_13 = arith.constant dense<0.000000e+00> : vector<16x64xf32>
    %28 = tpu.matmul %26, %27, %cst_13 {dimension_numbers = #tpu.dot_dimension_numbers<[1], [0], [0], [1], [0, 0, 1, 1], [], []>} : vector<16x64xbf16>, vector<64x64xbf16>, vector<16x64xf32> -> vector<16x64xf32>
    %cst_14 = arith.constant 0.000000e+00 : f32
    %29 = vector.broadcast %cst_14 : f32 to vector<16x64xf32>
    %30 = arith.subf %29, %28 : vector<16x64xf32>
    %31 = math.exp %30 : vector<16x64xf32>
    %cst_15 = arith.constant 1.000000e+00 : f32
    %32 = vector.broadcast %cst_15 : f32 to vector<16x64xf32>
    %33 = arith.addf %32, %31 : vector<16x64xf32>
    %34 = tpu.reciprocal %33 {approx = true} : vector<16x64xf32> -> vector<16x64xf32>
    %35 = arith.mulf %28, %34 : vector<16x64xf32>
    %36 = arith.truncf %35 : vector<16x64xf32> to vector<16x64xbf16>
    %c0_16 = arith.constant 0 : index
    %c0_17 = arith.constant 0 : index
    %37 = vector.load %arg8[%c0_16, %c0_17] : memref<64x128xbf16, #tpu.memory_space<vmem>>, vector<64x128xbf16>
    %cst_18 = arith.constant dense<0.000000e+00> : vector<16x128xf32>
    %38 = tpu.matmul %36, %37, %cst_18 {dimension_numbers = #tpu.dot_dimension_numbers<[1], [0], [0], [1], [0, 0, 1, 1], [], []>} : vector<16x64xbf16>, vector<64x128xbf16>, vector<16x128xf32> -> vector<16x128xf32>
    %39 = vector.broadcast %6 : vector<16x1xf32> to vector<16x128xf32>
    %40 = arith.mulf %38, %39 : vector<16x128xf32>
    %41 = tpu.iota {dimensions = array<i32: 1>} : vector<16x16xi32>
    %c0_19 = arith.constant 0 : index
    %c0_20 = arith.constant 0 : index
    %42 = vector.load %arg1[%c0_19, %c0_20] : memref<16x1xi32, #tpu.memory_space<vmem>>, vector<16x1xi32>
    %43 = vector.broadcast %42 : vector<16x1xi32> to vector<16x16xi32>
    %44 = arith.cmpi eq, %41, %43 : vector<16x16xi32>
    %45 = arith.extui %44 : vector<16x16xi1> to vector<16x16xi32>
    %46 = arith.sitofp %45 : vector<16x16xi32> to vector<16x16xf32>
    %47 = arith.truncf %46 : vector<16x16xf32> to vector<16x16xbf16>
    %c0_21 = arith.constant 0 : index
    %c0_22 = arith.constant 0 : index
    %48 = vector.load %arg4[%c0_21, %c0_22] : memref<16x128xbf16, #tpu.memory_space<vmem>>, vector<16x128xbf16>
    %cst_23 = arith.constant dense<0.000000e+00> : vector<16x128xf32>
    %49 = tpu.matmul %47, %48, %cst_23 {dimension_numbers = #tpu.dot_dimension_numbers<[1], [0], [0], [1], [0, 0, 1, 1], [], []>} : vector<16x16xbf16>, vector<16x128xbf16>, vector<16x128xf32> -> vector<16x128xf32>
    %50 = arith.mulf %49, %40 : vector<16x128xf32>
    %c0_24 = arith.constant 0 : index
    %c0_25 = arith.constant 0 : index
    %51 = vector.load %arg2[%c0_24, %c0_25] : memref<16x1xi32, #tpu.memory_space<vmem>>, vector<16x1xi32>
    %52 = vector.broadcast %51 : vector<16x1xi32> to vector<16x16xi32>
    %53 = arith.cmpi eq, %41, %52 : vector<16x16xi32>
    %54 = arith.extui %53 : vector<16x16xi1> to vector<16x16xi32>
    %55 = arith.sitofp %54 : vector<16x16xi32> to vector<16x16xf32>
    %c0_26 = arith.constant 0 : index
    %c0_27 = arith.constant 0 : index
    %56 = vector.load %arg9[%c0_26, %c0_27] : memref<16x128xf32, #tpu.memory_space<vmem>>, vector<16x128xf32>
    %cst_28 = arith.constant dense<0.000000e+00> : vector<16x128xf32>
    %57 = tpu.matmul %55, %50, %cst_28 {dimension_numbers = #tpu.dot_dimension_numbers<[0], [0], [1], [1], [0, 1, 1, 1], [], []>} : vector<16x16xf32>, vector<16x128xf32>, vector<16x128xf32> -> vector<16x128xf32>
    %58 = arith.addf %56, %57 : vector<16x128xf32>
    %c0_29 = arith.constant 0 : index
    %c0_30 = arith.constant 0 : index
    %59 = vector.load %arg9[%c0_29, %c0_30] : memref<16x128xf32, #tpu.memory_space<vmem>>, vector<16x128xf32>
    tpu.vector_store %arg9[%c0_29, %c0_30], %58 {strides = array<i32>} : memref<16x128xf32, #tpu.memory_space<vmem>>, vector<16x128xf32>,
    return
  }
  func.func @transform_0(%arg0: i32) -> (i32, i32) {
    %c0_i32 = arith.constant 0 : i32
    %c0_i32_0 = arith.constant 0 : i32
    return %arg0, %c0_i32 : i32, i32
  }
  func.func @transform_1(%arg0: i32) -> (i32, i32) {
    %c0_i32 = arith.constant 0 : i32
    %c0_i32_0 = arith.constant 0 : i32
    return %arg0, %c0_i32 : i32, i32
  }
  func.func @transform_2(%arg0: i32) -> (i32, i32) {
    %c0_i32 = arith.constant 0 : i32
    %c0_i32_0 = arith.constant 0 : i32
    return %arg0, %c0_i32 : i32, i32
  }
  func.func @transform_3(%arg0: i32) -> (i32, i32) {
    %c0_i32 = arith.constant 0 : i32
    %c0_i32_0 = arith.constant 0 : i32
    %c0_i32_1 = arith.constant 0 : i32
    return %c0_i32, %c0_i32_0 : i32, i32
  }
  func.func @transform_4(%arg0: i32) -> (i32, i32) {
    %c0_i32 = arith.constant 0 : i32
    %c0_i32_0 = arith.constant 0 : i32
    %c0_i32_1 = arith.constant 0 : i32
    return %c0_i32, %c0_i32_0 : i32, i32
  }
  func.func @transform_5(%arg0: i32) -> (i32, i32) {
    %c0_i32 = arith.constant 0 : i32
    %c0_i32_0 = arith.constant 0 : i32
    %c0_i32_1 = arith.constant 0 : i32
    return %c0_i32, %c0_i32_0 : i32, i32
  }
  func.func @transform_6(%arg0: i32) -> (i32, i32) {
    %c0_i32 = arith.constant 0 : i32
    %c0_i32_0 = arith.constant 0 : i32
    %c0_i32_1 = arith.constant 0 : i32
    return %c0_i32, %c0_i32_0 : i32, i32
  }
  func.func @transform_7(%arg0: i32) -> (i32, i32) {
    %c0_i32 = arith.constant 0 : i32
    %c0_i32_0 = arith.constant 0 : i32
    %c0_i32_1 = arith.constant 0 : i32
    return %c0_i32, %c0_i32_0 : i32, i32
  }
  func.func @transform_8(%arg0: i32) -> (i32, i32) {
    %c0_i32 = arith.constant 0 : i32
    %c0_i32_0 = arith.constant 0 : i32
    %c0_i32_1 = arith.constant 0 : i32
    return %c0_i32, %c0_i32_0 : i32, i32
  }
}

</mosaic_0001>

<llo_original>
// kernel: tpu_custom_call.1
$region0: #{tpu_custom_call.1}
  #allocation0 [shape = 'u32[]', space=smem, size = 0x4, offset = 0x4, fixed_abs, tag = 'smem constant byte address 0x4 - core index']
  #allocation1 [shape = 'u32[144,128]{1,0:T(1,128)}', space=vmem, size = 0x12000, scoped, tag = 'internal scratch']
  %s0 = inlined_call_operand.vmem [shape: s32[48,1], index: 0, kind: input, shape index: {}]
  %s1 = inlined_call_operand.vmem [shape: s32[48,1], index: 1, kind: input, shape index: {}]
  %s2 = inlined_call_operand.vmem [shape: bf16[48,9], index: 2, kind: input, shape index: {}]
  %s3 = inlined_call_operand.vmem [shape: bf16[16,128], index: 3, kind: input, shape index: {}]
  %s4 = inlined_call_operand.vmem [shape: bf16[8,64], index: 4, kind: input, shape index: {}]
  %s5 = inlined_call_operand.vmem [shape: bf16[64,64], index: 5, kind: input, shape index: {}]
  %s6 = inlined_call_operand.vmem [shape: bf16[64,64], index: 6, kind: input, shape index: {}]
  %s7 = inlined_call_operand.vmem [shape: bf16[64,128], index: 7, kind: input, shape index: {}]
  %s8 = inlined_call_operand.hbm [shape: f32[16,128], index: 8, kind: output, shape index: {}]
  %s9 = sld [smem:[#allocation0]]
  $region69: #{tpu_custom_call.1} parent=0
    _
  %s11 = ssub.s32 1, %s9
  %s12 = scalar_select 0, %s11, %s9
  $region1: #{tpu_custom_call.1} parent=0
    #allocation2 [shape = 'u8[8192]{0}', space=vmem, size = 0x2000, scoped, tag = 'output window, operand 0, single buffered']
    #allocation3 [shape = 's32[2]{0}', space=sflag, size = 0x8, scoped, tag = 'scoped memory for tpu_custom_call.1']
    %13 = vsyncpa [#allocation3], 0
    loop: start=0, step=1, limit=5
    $region2: #{tpu_custom_call.1} parent=1 // loop_pre_header
      _
    $region3: #{tpu_custom_call.1} parent=1 // loop_header
      %s15 = sphi 0, %s19
      %p16 = scmp.ge.s32.totalorder %s15, 5
      %s25 = sphi 0, %s27
      %s28 = sphi 0, %s25
      %s29 = sphi 0, %s28
      %s45 = sphi 0, %s29
      %s51 = sphi 0, %s53
      %s54 = sphi 0, %s51
      %s55 = sphi 0, %s54
      %s71 = sphi 0, %s55
      %s77 = sphi 0, %s79
      %s80 = sphi 0, %s77
      %s81 = sphi 0, %s80
      %s97 = sphi 0, %s81
      %s101 = sphi 0, %s101
      %s103 = sphi 0, %s101
      %s104 = sphi 0, %s103
      %s118 = sphi 0, %s104
      %s122 = sphi 0, %s122
      %s124 = sphi 0, %s122
      %s125 = sphi 0, %s124
      %s139 = sphi 0, %s125
      %s143 = sphi 0, %s143
      %s145 = sphi 0, %s143
      %s146 = sphi 0, %s145
      %s160 = sphi 0, %s146
      %s164 = sphi 0, %s164
      %s166 = sphi 0, %s164
      %s167 = sphi 0, %s166
      %s181 = sphi 0, %s167
      %s185 = sphi 0, %s185
      %s187 = sphi 0, %s185
      %s188 = sphi 0, %s187
      %s202 = sphi 0, %s188
      %s206 = sphi 0, %s206
      %s208 = sphi 0, %s206
      %s209 = sphi 0, %s208
      %s223 = sphi 0, %s209
    $region4: #{tpu_custom_call.1} parent=1 // loop_header_branch
      %18 = sbr.rel (%p16) target = $region8
    $region5: #{tpu_custom_call.1} parent=1 // loop_body
      %s20 = ssub.s32 %s15, 1
      %s21 = ssub.s32 %s15, 2
      %s22 = sadd.s32 %s15, 1
      %s23 = ssub.s32 %s15, %s22
      %p24 = scmp.eq.s32.totalorder %s23, 0
      %s26 = sadd.s32 %s25, 1
      %s27 = scalar_select %p24, %s25, %s26
      %p30 = pneg %p24
      %p31 = scmp.eq.s32.totalorder %s15, 2
      %p32 = por %p30, %p31
      %p33 = scmp.ne.s32.totalorder %s25, %s28
      %p34 = scmp.eq.s32.totalorder %s15, 0
      %p35 = por %p33, %p34
      %p36 = scmp.ne.s32.totalorder %s25, %s28
      %p37 = scmp.eq.s32.totalorder %s20, 2
      %p38 = por %p36, %p37
      %p39 = scmp.ne.s32.totalorder %s28, %s29
      %p40 = scmp.eq.s32.totalorder %s20, 0
      %p41 = por %p39, %p40
      %p42 = scmp.ne.s32.totalorder %s28, %s29
      %p43 = scmp.eq.s32.totalorder %s21, 2
      %p44 = por %p42, %p43
      %p46 = scmp.ne.s32.totalorder %s29, %s45
      %p47 = scmp.eq.s32.totalorder %s21, 0
      %p48 = por %p46, %p47
      %s49 = ssub.s32 %s15, %s22
      %p50 = scmp.eq.s32.totalorder %s49, 0
      %s52 = sadd.s32 %s51, 1
      %s53 = scalar_select %p50, %s51, %s52
      %p56 = pneg %p50
      %p57 = scmp.eq.s32.totalorder %s15, 2
      %p58 = por %p56, %p57
      %p59 = scmp.ne.s32.totalorder %s51, %s54
      %p60 = scmp.eq.s32.totalorder %s15, 0
      %p61 = por %p59, %p60
      %p62 = scmp.ne.s32.totalorder %s51, %s54
      %p63 = scmp.eq.s32.totalorder %s20, 2
      %p64 = por %p62, %p63
      %p65 = scmp.ne.s32.totalorder %s54, %s55
      %p66 = scmp.eq.s32.totalorder %s20, 0
      %p67 = por %p65, %p66
      %p68 = scmp.ne.s32.totalorder %s54, %s55
      %p69 = scmp.eq.s32.totalorder %s21, 2
      %p70 = por %p68, %p69
      %p72 = scmp.ne.s32.totalorder %s55, %s71
      %p73 = scmp.eq.s32.totalorder %s21, 0
      %p74 = por %p72, %p73
      %s75 = ssub.s32 %s15, %s22
      %p76 = scmp.eq.s32.totalorder %s75, 0
      %s78 = sadd.s32 %s77, 1
      %s79 = scalar_select %p76, %s77, %s78
      %p82 = pneg %p76
      %p83 = scmp.eq.s32.totalorder %s15, 2
      %p84 = por %p82, %p83
      %p85 = scmp.ne.s32.totalorder %s77, %s80
      %p86 = scmp.eq.s32.totalorder %s15, 0
      %p87 = por %p85, %p86
      %p88 = scmp.ne.s32.totalorder %s77, %s80
      %p89 = scmp.eq.s32.totalorder %s20, 2
      %p90 = por %p88, %p89
      %p91 = scmp.ne.s32.totalorder %s80, %s81
      %p92 = scmp.eq.s32.totalorder %s20, 0
      %p93 = por %p91, %p92
      %p94 = scmp.ne.s32.totalorder %s80, %s81
      %p95 = scmp.eq.s32.totalorder %s21, 2
      %p96 = por %p94, %p95
      %p98 = scmp.ne.s32.totalorder %s81, %s97
      %p99 = scmp.eq.s32.totalorder %s21, 0
      %p100 = por %p98, %p99
      %s102 = sadd.s32 %s101, 1
      %p105 = scmp.eq.s32.totalorder %s15, 2
      %p106 = scmp.ne.s32.totalorder %s101, %s103
      %p107 = scmp.eq.s32.totalorder %s15, 0
      %p108 = por %p106, %p107
      %p109 = scmp.ne.s32.totalorder %s101, %s103
      %p110 = scmp.eq.s32.totalorder %s20, 2
      %p111 = por %p109, %p110
      %p112 = scmp.ne.s32.totalorder %s103, %s104
      %p113 = scmp.eq.s32.totalorder %s20, 0
      %p114 = por %p112, %p113
      %p115 = scmp.ne.s32.totalorder %s103, %s104
      %p116 = scmp.eq.s32.totalorder %s21, 2
      %p117 = por %p115, %p116
      %p119 = scmp.ne.s32.totalorder %s104, %s118
      %p120 = scmp.eq.s32.totalorder %s21, 0
      %p121 = por %p119, %p120
      %s123 = sadd.s32 %s122, 1
      %p126 = scmp.eq.s32.totalorder %s15, 2
      %p127 = scmp.ne.s32.totalorder %s122, %s124
      %p128 = scmp.eq.s32.totalorder %s15, 0
      %p129 = por %p127, %p128
      %p130 = scmp.ne.s32.totalorder %s122, %s124
      %p131 = scmp.eq.s32.totalorder %s20, 2
      %p132 = por %p130, %p131
      %p133 = scmp.ne.s32.totalorder %s124, %s125
      %p134 = scmp.eq.s32.totalorder %s20, 0
      %p135 = por %p133, %p134
      %p136 = scmp.ne.s32.totalorder %s124, %s125
      %p137 = scmp.eq.s32.totalorder %s21, 2
      %p138 = por %p136, %p137
      %p140 = scmp.ne.s32.totalorder %s125, %s139
      %p141 = scmp.eq.s32.totalorder %s21, 0
      %p142 = por %p140, %p141
      %s144 = sadd.s32 %s143, 1
      %p147 = scmp.eq.s32.totalorder %s15, 2
      %p148 = scmp.ne.s32.totalorder %s143, %s145
      %p149 = scmp.eq.s32.totalorder %s15, 0
      %p150 = por %p148, %p149
      %p151 = scmp.ne.s32.totalorder %s143, %s145
      %p152 = scmp.eq.s32.totalorder %s20, 2
      %p153 = por %p151, %p152
      %p154 = scmp.ne.s32.totalorder %s145, %s146
      %p155 = scmp.eq.s32.totalorder %s20, 0
      %p156 = por %p154, %p155
      %p157 = scmp.ne.s32.totalorder %s145, %s146
      %p158 = scmp.eq.s32.totalorder %s21, 2
      %p159 = por %p157, %p158
      %p161 = scmp.ne.s32.totalorder %s146, %s160
      %p162 = scmp.eq.s32.totalorder %s21, 0
      %p163 = por %p161, %p162
      %s165 = sadd.s32 %s164, 1
      %p168 = scmp.eq.s32.totalorder %s15, 2
      %p169 = scmp.ne.s32.totalorder %s164, %s166
      %p170 = scmp.eq.s32.totalorder %s15, 0
      %p171 = por %p169, %p170
      %p172 = scmp.ne.s32.totalorder %s164, %s166
      %p173 = scmp.eq.s32.totalorder %s20, 2
      %p174 = por %p172, %p173
      %p175 = scmp.ne.s32.totalorder %s166, %s167
      %p176 = scmp.eq.s32.totalorder %s20, 0
      %p177 = por %p175, %p176
      %p178 = scmp.ne.s32.totalorder %s166, %s167
      %p179 = scmp.eq.s32.totalorder %s21, 2
      %p180 = por %p178, %p179
      %p182 = scmp.ne.s32.totalorder %s167, %s181
      %p183 = scmp.eq.s32.totalorder %s21, 0
      %p184 = por %p182, %p183
      %s186 = sadd.s32 %s185, 1
      %p189 = scmp.eq.s32.totalorder %s15, 2
      %p190 = scmp.ne.s32.totalorder %s185, %s187
      %p191 = scmp.eq.s32.totalorder %s15, 0
      %p192 = por %p190, %p191
      %p193 = scmp.ne.s32.totalorder %s185, %s187
      %p194 = scmp.eq.s32.totalorder %s20, 2
      %p195 = por %p193, %p194
      %p196 = scmp.ne.s32.totalorder %s187, %s188
      %p197 = scmp.eq.s32.totalorder %s20, 0
      %p198 = por %p196, %p197
      %p199 = scmp.ne.s32.totalorder %s187, %s188
      %p200 = scmp.eq.s32.totalorder %s21, 2
      %p201 = por %p199, %p200
      %p203 = scmp.ne.s32.totalorder %s188, %s202
      %p204 = scmp.eq.s32.totalorder %s21, 0
      %p205 = por %p203, %p204
      %s207 = sadd.s32 %s206, 1
      %p210 = scmp.eq.s32.totalorder %s15, 2
      %p211 = scmp.ne.s32.totalorder %s206, %s208
      %p212 = scmp.eq.s32.totalorder %s15, 0
      %p213 = por %p211, %p212
      %p214 = scmp.ne.s32.totalorder %s206, %s208
      %p215 = scmp.eq.s32.totalorder %s20, 2
      %p216 = por %p214, %p215
      %p217 = scmp.ne.s32.totalorder %s208, %s209
      %p218 = scmp.eq.s32.totalorder %s20, 0
      %p219 = por %p217, %p218
      %p220 = scmp.ne.s32.totalorder %s208, %s209
      %p221 = scmp.eq.s32.totalorder %s21, 2
      %p222 = por %p220, %p221
      %p224 = scmp.ne.s32.totalorder %s209, %s223
      %p225 = scmp.eq.s32.totalorder %s21, 0
      %p226 = por %p224, %p225
      %p227 = scmp.le.s32.totalorder 1, %s15
      %p228 = scmp.lt.s32.totalorder %s15, 4
      %p229 = pnand %p227, %p228
      %p230 = pneg %p229
      // Predicated region
      $region9: #{tpu_custom_call.1} parent=5 // pred_check
        _
      $region10: #{tpu_custom_call.1} parent=5 // pred_check_branch
        %232 = sbr.rel (%p229) target = $region12
      $region11: #{tpu_custom_call.1} parent=5 // pred_region
        %s233 = ssub.s32 %s15, 1
        // Predicated region
        $region13: #{tpu_custom_call.1} parent=11 // pred_check
          %p234 = pneg %p114
        $region14: #{tpu_custom_call.1} parent=11 // pred_check_branch
          %236 = sbr.rel (%p234) target = $region16
        $region15: #{tpu_custom_call.1} parent=11 // pred_region
          _
        $region16: #{tpu_custom_call.1} parent=11 // pred_fallthru
          _
        // Predicated region
        $region17: #{tpu_custom_call.1} parent=11 // pred_check
          %p237 = pneg %p135
        $region18: #{tpu_custom_call.1} parent=11 // pred_check_branch
          %239 = sbr.rel (%p237) target = $region20
        $region19: #{tpu_custom_call.1} parent=11 // pred_region
          _
        $region20: #{tpu_custom_call.1} parent=11 // pred_fallthru
          _
        // Predicated region
        $region21: #{tpu_custom_call.1} parent=11 // pred_check
          %p240 = pneg %p156
        $region22: #{tpu_custom_call.1} parent=11 // pred_check_branch
          %242 = sbr.rel (%p240) target = $region24
        $region23: #{tpu_custom_call.1} parent=11 // pred_region
          _
        $region24: #{tpu_custom_call.1} parent=11 // pred_fallthru
          _
        // Predicated region
        $region25: #{tpu_custom_call.1} parent=11 // pred_check
          %p243 = pneg %p177
        $region26: #{tpu_custom_call.1} parent=11 // pred_check_branch
          %245 = sbr.rel (%p243) target = $region28
        $region27: #{tpu_custom_call.1} parent=11 // pred_region
          _
        $region28: #{tpu_custom_call.1} parent=11 // pred_fallthru
          _
        // Predicated region
        $region29: #{tpu_custom_call.1} parent=11 // pred_check
          %p246 = pneg %p198
        $region30: #{tpu_custom_call.1} parent=11 // pred_check_branch
          %248 = sbr.rel (%p246) target = $region32
        $region31: #{tpu_custom_call.1} parent=11 // pred_region
          _
        $region32: #{tpu_custom_call.1} parent=11 // pred_fallthru
          _
      $region12: #{tpu_custom_call.1} parent=5 // pred_fallthru
        _
      %p249 = scmp.lt.s32.totalorder %s15, 3
      // Predicated region
      $region33: #{tpu_custom_call.1} parent=5 // pred_check
        %p250 = pneg %p249
      $region34: #{tpu_custom_call.1} parent=5 // pred_check_branch
        %252 = sbr.rel (%p250) target = $region36
      $region35: #{tpu_custom_call.1} parent=5 // pred_region
        // Predicated region
        $region37: #{tpu_custom_call.1} parent=35 // pred_check
          %p253 = pneg %p35
        $region38: #{tpu_custom_call.1} parent=35 // pred_check_branch
          %255 = sbr.rel (%p253) target = $region40
        $region39: #{tpu_custom_call.1} parent=35 // pred_region
          %s256 = smul.u32 2, %s15
          %p257 = scmp.lt.s32.totalorder %s256, 5
          %s258 = scalar_select %p257, %s256, 5
          %s259 = smul.addr %s258, 8
          %s260 = scalar_lea.vmem %s0, %s259
          %s261 = smul.u32 2, %s15
        $region40: #{tpu_custom_call.1} parent=35 // pred_fallthru
          _
        // Predicated region
        $region41: #{tpu_custom_call.1} parent=35 // pred_check
          %p262 = pneg %p61
        $region42: #{tpu_custom_call.1} parent=35 // pred_check_branch
          %264 = sbr.rel (%p262) target = $region44
        $region43: #{tpu_custom_call.1} parent=35 // pred_region
          %s265 = smul.u32 2, %s15
          %p266 = scmp.lt.s32.totalorder %s265, 5
          %s267 = scalar_select %p266, %s265, 5
          %s268 = smul.addr %s267, 8
          %s269 = scalar_lea.vmem %s1, %s268
          %s270 = smul.u32 2, %s15
        $region44: #{tpu_custom_call.1} parent=35 // pred_fallthru
          _
        // Predicated region
        $region45: #{tpu_custom_call.1} parent=35 // pred_check
          %p271 = pneg %p87
        $region46: #{tpu_custom_call.1} parent=35 // pred_check_branch
          %273 = sbr.rel (%p271) target = $region48
        $region47: #{tpu_custom_call.1} parent=35 // pred_region
          %s274 = smul.u32 2, %s15
          %p275 = scmp.lt.s32.totalorder %s274, 5
          %s276 = scalar_select %p275, %s274, 5
          %s277 = smul.addr %s276, 4
          %s278 = scalar_lea.vmem %s2, %s277
          %s279 = smul.u32 2, %s15
        $region48: #{tpu_custom_call.1} parent=35 // pred_fallthru
          _
      $region36: #{tpu_custom_call.1} parent=5 // pred_fallthru
        _
      %p280 = scmp.le.s32.totalorder 1, %s15
      %p281 = scmp.lt.s32.totalorder %s15, 4
      %p282 = pnand %p280, %p281
      %p283 = pneg %p282
      // Predicated region
      $region49: #{tpu_custom_call.1} parent=5 // pred_check
        _
      $region50: #{tpu_custom_call.1} parent=5 // pred_check_branch
        %285 = sbr.rel (%p282) target = $region52
      $region51: #{tpu_custom_call.1} parent=5 // pred_region
        %s286 = ssub.s32 %s15, 1
        %s287 = smul.u32 2, %s20
        %p288 = scmp.lt.s32.totalorder %s287, 5
        %s289 = scalar_select %p288, %s287, 5
        %s290 = smul.addr %s289, 8
        %s291 = scalar_lea.vmem %s0, %s290
        %p292 = pneg %p41
        %p293 = pneg %p38
        %s294 = smul.u32 2, %s20
        %p295 = scmp.lt.s32.totalorder %s294, 5
        %s296 = scalar_select %p295, %s294, 5
        %s297 = smul.addr %s296, 8
        %s298 = scalar_lea.vmem %s1, %s297
        %p299 = pneg %p67
        %p300 = pneg %p64
        %s301 = smul.u32 2, %s20
        %p302 = scmp.lt.s32.totalorder %s301, 5
        %s303 = scalar_select %p302, %s301, 5
        %s304 = smul.addr %s303, 4
        %s305 = scalar_lea.vmem %s2, %s304
        %p306 = pneg %p93
        %p307 = pneg %p90
        %p308 = pneg %p114
        %p309 = pneg %p111
        %p310 = pneg %p135
        %p311 = pneg %p132
        %p312 = pneg %p156
        %p313 = pneg %p153
        %p314 = pneg %p177
        %p315 = pneg %p174
        %p316 = pneg %p198
        %p317 = pneg %p195
        %p318 = pneg %p219
        %p319 = pneg %p216
        %s320 = smul.u32 2, %s20
        %p321 = scmp.lt.s32.totalorder %s320, 5
        %s322 = scalar_select %p321, %s320, 5
        %s323 = smul.addr %s322, 8
        %s324 = scalar_lea.vmem %s0, %s323
        %s325 = smul.u32 2, %s20
        %s326 = smul.u32 2, %s20
        %p327 = scmp.lt.s32.totalorder %s326, 5
        %s328 = scalar_select %p327, %s326, 5
        %s329 = smul.addr %s328, 8
        %s330 = scalar_lea.vmem %s1, %s329
        %s331 = smul.u32 2, %s20
        %s332 = smul.u32 2, %s20
        %p333 = scmp.lt.s32.totalorder %s332, 5
        %s334 = scalar_select %p333, %s332, 5
        %s335 = smul.addr %s334, 4
        %s336 = scalar_lea.vmem %s2, %s335
        %s337 = smul.u32 2, %s20
        %p339 = scmp.eq.s32.totalorder %s20, 0
        // Predicated region
        $region53: #{tpu_custom_call.1} parent=51 // pred_check
          %p340 = pneg %p339
        $region54: #{tpu_custom_call.1} parent=51 // pred_check_branch
          %342 = sbr.rel (%p340) target = $region56
        $region55: #{tpu_custom_call.1} parent=51 // pred_region
          %343 = vst [vmem:[#allocation2] sm:$0xff] 0.0
          %344 = vst [vmem:[#allocation2 + $0x8] sm:$0xff] 0.0
        $region56: #{tpu_custom_call.1} parent=51 // pred_fallthru
          _
        %v345 = vld [vmem:[%s336] sm:$0xf]
        %v346 = vld [vmem:[%s336 + $0x4] sm:$0xf]
        %v347 = vunpack.c.l.bf16 %v345
        %v348 = vunpack.c.l.bf16 %v346
        %v349 = vld [vmem:[%s4] sm:$0xf]
        %v352 = vunpack.c.l.b16 %v345
        %v353 = vunpack.c.l.b16 %v346
        %v354 = vpack.c.b16 %v353, %v352
        %vm355 = vcmask 64512
        %v357 = vsel %vm355, %v354, 0
        %vm359 = vcmask 1043456
        %v361 = vsel %vm359, %v349, 0
        %363 = vmatprep.subr.bf16.mxu0 0
        %364 = vmatpush1.bf16.msra.mxu0 %v361
        %365 = vmatprep.subr.bf16.mxu0 0
        %366 = vmatpush1.bf16.msra.mxu0 0
        %367 = vmatprep.subr.bf16.mxu0 0
        %368 = vmatpush1.bf16.msra.mxu0 0
        %369 = vmatprep.subr.bf16.mxu0 0
        %370 = vmatpush1.bf16.msra.mxu0 0
        %371 = vmatprep.subr.bf16.mxu0 0
        %372 = vmatpush1.bf16.msra.mxu0 0
        %373 = vmatprep.subr.bf16.mxu0 0
        %374 = vmatpush1.bf16.msra.mxu0 0
        %375 = vmatprep.subr.bf16.mxu0 0
        %376 = vmatpush1.bf16.msra.mxu0 0
        %377 = vmatprep.subr.bf16.mxu0 0
        %378 = vmatpush1.bf16.msra.mxu0 0
        %379 = vmatprep.subr.bf16.mxu0 0
        %380 = vmatpush1.bf16.msra.mxu0 0
        %381 = vmatprep.subr.bf16.mxu0 0
        %382 = vmatpush1.bf16.msra.mxu0 0
        %383 = vmatprep.subr.bf16.mxu0 0
        %384 = vmatpush1.bf16.msra.mxu0 0
        %385 = vmatprep.subr.bf16.mxu0 0
        %386 = vmatpush1.bf16.msra.mxu0 0
        %387 = vmatprep.subr.bf16.mxu0 0
        %388 = vmatpush1.bf16.msra.mxu0 0
        %389 = vmatprep.subr.bf16.mxu0 0
        %390 = vmatpush1.bf16.msra.mxu0 0
        %391 = vmatprep.subr.bf16.mxu0 0
        %392 = vmatpush1.bf16.msra.mxu0 0
        %393 = vmatprep.subr.bf16.mxu0 0
        %394 = vmatpush1.bf16.msra.mxu0 0
        %395 = vmatprep.mubr.bf16.mxu0 0
        %396 = vmatmul.mubr.bf16.gmra.mrb[0].mxu0 %v357
        %v397 = vpop.f32.mrb[0].mxu0
        %v398 = vadd.f32 0.0, %v397
        %v399 = vpop.f32.mrb[0].mxu0
        %v400 = vpop.f32.mrb[0].mxu0
        %v401 = vadd.f32 0.0, %v400
        %v402 = vpop.f32.mrb[0].mxu0
        %403 = vdwg.mxu0
        %v404 = vsub.f32 0.0, %v398
        %v405 = vsub.f32 0.0, %v401
        %v406 = vmul.f32 %v404, 1.442695
        %v407 = vpow.pop %v406
        %v408 = vmul.f32 %v405, 1.442695
        %v409 = vpow.pop %v408
        %v410 = vadd.f32 %v407, 1.0
        %v411 = vadd.f32 %v409, 1.0
        %v412 = vrcp.pop %v410
        %v413 = vrcp.pop %v411
        %v414 = vmul.f32 %v398, %v412
        %v415 = vmul.f32 %v401, %v413
        %v416 = vpack.c.bf16 %v415, %v414
        %v417 = vld [vmem:[%s5] sm:$0xf]
        %v418 = vld [vmem:[%s5 + $0x4] sm:$0xf]
        %v419 = vld [vmem:[%s5 + $0x8] sm:$0xf]
        %v420 = vld [vmem:[%s5 + $0xc] sm:$0xf]
        %v421 = vld [vmem:[%s5 + $0x10] sm:$0xf]
        %v422 = vld [vmem:[%s5 + $0x14] sm:$0xf]
        %v423 = vld [vmem:[%s5 + $0x18] sm:$0xf]
        %v424 = vld [vmem:[%s5 + $0x1c] sm:$0xf]
        %v433 = vunpack.c.l.b16 %v417
        %v434 = vunpack.c.l.b16 %v418
        %v435 = vunpack.c.l.b16 %v419
        %v436 = vunpack.c.l.b16 %v420
        %v437 = vunpack.c.l.b16 %v421
        %v438 = vunpack.c.l.b16 %v422
        %v439 = vunpack.c.l.b16 %v423
        %v440 = vunpack.c.l.b16 %v424
        %v441 = vpack.c.b16 %v434, %v433
        %v442 = vpack.c.b16 %v436, %v435
        %v443 = vpack.c.b16 %v438, %v437
        %v444 = vpack.c.b16 %v440, %v439
        %vm449 = vcmask 523264
        %v451 = vsel %vm449, %v416, 0
        %453 = vmatprep.subr.bf16.mxu0 0
        %454 = vmatpush1.bf16.msra.mxu0 %v441
        %455 = vmatprep.subr.bf16.mxu0 0
        %456 = vmatpush1.bf16.msra.mxu0 %v442
        %457 = vmatprep.subr.bf16.mxu0 0
        %458 = vmatpush1.bf16.msra.mxu0 %v443
        %459 = vmatprep.subr.bf16.mxu0 0
        %460 = vmatpush1.bf16.msra.mxu0 %v444
        %461 = vmatprep.subr.bf16.mxu0 0
        %462 = vmatpush1.bf16.msra.mxu0 0
        %463 = vmatprep.subr.bf16.mxu0 0
        %464 = vmatpush1.bf16.msra.mxu0 0
        %465 = vmatprep.subr.bf16.mxu0 0
        %466 = vmatpush1.bf16.msra.mxu0 0
        %467 = vmatprep.subr.bf16.mxu0 0
        %468 = vmatpush1.bf16.msra.mxu0 0
        %469 = vmatprep.subr.bf16.mxu0 0
        %470 = vmatpush1.bf16.msra.mxu0 0
        %471 = vmatprep.subr.bf16.mxu0 0
        %472 = vmatpush1.bf16.msra.mxu0 0
        %473 = vmatprep.subr.bf16.mxu0 0
        %474 = vmatpush1.bf16.msra.mxu0 0
        %475 = vmatprep.subr.bf16.mxu0 0
        %476 = vmatpush1.bf16.msra.mxu0 0
        %477 = vmatprep.subr.bf16.mxu0 0
        %478 = vmatpush1.bf16.msra.mxu0 0
        %479 = vmatprep.subr.bf16.mxu0 0
        %480 = vmatpush1.bf16.msra.mxu0 0
        %481 = vmatprep.subr.bf16.mxu0 0
        %482 = vmatpush1.bf16.msra.mxu0 0
        %483 = vmatprep.subr.bf16.mxu0 0
        %484 = vmatpush1.bf16.msra.mxu0 0
        %485 = vmatprep.mubr.bf16.mxu0 0
        %486 = vmatmul.mubr.bf16.gmra.mrb[0].mxu0 %v451
        %v487 = vpop.f32.mrb[0].mxu0
        %v488 = vadd.f32 0.0, %v487
        %v489 = vpop.f32.mrb[0].mxu0
        %v490 = vpop.f32.mrb[0].mxu0
        %v491 = vadd.f32 0.0, %v490
        %v492 = vpop.f32.mrb[0].mxu0
        %493 = vdwg.mxu0
        %v494 = vsub.f32 0.0, %v488
        %v495 = vsub.f32 0.0, %v491
        %v496 = vmul.f32 %v494, 1.442695
        %v497 = vpow.pop %v496
        %v498 = vmul.f32 %v495, 1.442695
        %v499 = vpow.pop %v498
        %v500 = vadd.f32 %v497, 1.0
        %v501 = vadd.f32 %v499, 1.0
        %v502 = vrcp.pop %v500
        %v503 = vrcp.pop %v501
        %v504 = vmul.f32 %v488, %v502
        %v505 = vmul.f32 %v491, %v503
        %v506 = vpack.c.bf16 %v505, %v504
        %v507 = vld [vmem:[%s6] sm:$0xf]
        %v508 = vld [vmem:[%s6 + $0x4] sm:$0xf]
        %v509 = vld [vmem:[%s6 + $0x8] sm:$0xf]
        %v510 = vld [vmem:[%s6 + $0xc] sm:$0xf]
        %v511 = vld [vmem:[%s6 + $0x10] sm:$0xf]
        %v512 = vld [vmem:[%s6 + $0x14] sm:$0xf]
        %v513 = vld [vmem:[%s6 + $0x18] sm:$0xf]
        %v514 = vld [vmem:[%s6 + $0x1c] sm:$0xf]
        %v523 = vunpack.c.l.b16 %v507
        %v524 = vunpack.c.l.b16 %v508
        %v525 = vunpack.c.l.b16 %v509
        %v526 = vunpack.c.l.b16 %v510
        %v527 = vunpack.c.l.b16 %v511
        %v528 = vunpack.c.l.b16 %v512
        %v529 = vunpack.c.l.b16 %v513
        %v530 = vunpack.c.l.b16 %v514
        %v531 = vpack.c.b16 %v524, %v523
        %v532 = vpack.c.b16 %v526, %v525
        %v533 = vpack.c.b16 %v528, %v527
        %v534 = vpack.c.b16 %v530, %v529
        %v540 = vsel %vm449, %v506, 0
        %542 = vmatprep.subr.bf16.mxu0 0
        %543 = vmatpush1.bf16.msra.mxu0 %v531
        %544 = vmatprep.subr.bf16.mxu0 0
        %545 = vmatpush1.bf16.msra.mxu0 %v532
        %546 = vmatprep.subr.bf16.mxu0 0
        %547 = vmatpush1.bf16.msra.mxu0 %v533
        %548 = vmatprep.subr.bf16.mxu0 0
        %549 = vmatpush1.bf16.msra.mxu0 %v534
        %550 = vmatprep.subr.bf16.mxu0 0
        %551 = vmatpush1.bf16.msra.mxu0 0
        %552 = vmatprep.subr.bf16.mxu0 0
        %553 = vmatpush1.bf16.msra.mxu0 0
        %554 = vmatprep.subr.bf16.mxu0 0
        %555 = vmatpush1.bf16.msra.mxu0 0
        %556 = vmatprep.subr.bf16.mxu0 0
        %557 = vmatpush1.bf16.msra.mxu0 0
        %558 = vmatprep.subr.bf16.mxu0 0
        %559 = vmatpush1.bf16.msra.mxu0 0
        %560 = vmatprep.subr.bf16.mxu0 0
        %561 = vmatpush1.bf16.msra.mxu0 0
        %562 = vmatprep.subr.bf16.mxu0 0
        %563 = vmatpush1.bf16.msra.mxu0 0
        %564 = vmatprep.subr.bf16.mxu0 0
        %565 = vmatpush1.bf16.msra.mxu0 0
        %566 = vmatprep.subr.bf16.mxu0 0
        %567 = vmatpush1.bf16.msra.mxu0 0
        %568 = vmatprep.subr.bf16.mxu0 0
        %569 = vmatpush1.bf16.msra.mxu0 0
        %570 = vmatprep.subr.bf16.mxu0 0
        %571 = vmatpush1.bf16.msra.mxu0 0
        %572 = vmatprep.subr.bf16.mxu0 0
        %573 = vmatpush1.bf16.msra.mxu0 0
        %574 = vmatprep.mubr.bf16.mxu0 0
        %575 = vmatmul.mubr.bf16.gmra.mrb[0].mxu0 %v540
        %v576 = vpop.f32.mrb[0].mxu0
        %v577 = vadd.f32 0.0, %v576
        %v578 = vpop.f32.mrb[0].mxu0
        %v579 = vpop.f32.mrb[0].mxu0
        %v580 = vadd.f32 0.0, %v579
        %v581 = vpop.f32.mrb[0].mxu0
        %582 = vdwg.mxu0
        %v583 = vsub.f32 0.0, %v577
        %v584 = vsub.f32 0.0, %v580
        %v585 = vmul.f32 %v583, 1.442695
        %v586 = vpow.pop %v585
        %v587 = vmul.f32 %v584, 1.442695
        %v588 = vpow.pop %v587
        %v589 = vadd.f32 %v586, 1.0
        %v590 = vadd.f32 %v588, 1.0
        %v591 = vrcp.pop %v589
        %v592 = vrcp.pop %v590
        %v593 = vmul.f32 %v577, %v591
        %v594 = vmul.f32 %v580, %v592
        %v595 = vpack.c.bf16 %v594, %v593
        %v596 = vld [vmem:[%s7] sm:$0xf]
        %v597 = vld [vmem:[%s7 + $0x4] sm:$0xf]
        %v598 = vld [vmem:[%s7 + $0x8] sm:$0xf]
        %v599 = vld [vmem:[%s7 + $0xc] sm:$0xf]
        %v600 = vld [vmem:[%s7 + $0x10] sm:$0xf]
        %v601 = vld [vmem:[%s7 + $0x14] sm:$0xf]
        %v602 = vld [vmem:[%s7 + $0x18] sm:$0xf]
        %v603 = vld [vmem:[%s7 + $0x1c] sm:$0xf]
        %v612 = vunpack.c.l.b16 %v596
        %v613 = vunpack.c.l.b16 %v597
        %v614 = vunpack.c.l.b16 %v598
        %v615 = vunpack.c.l.b16 %v599
        %v616 = vunpack.c.l.b16 %v600
        %v617 = vunpack.c.l.b16 %v601
        %v618 = vunpack.c.l.b16 %v602
        %v619 = vunpack.c.l.b16 %v603
        %v620 = vpack.c.b16 %v613, %v612
        %v621 = vpack.c.b16 %v615, %v614
        %v622 = vpack.c.b16 %v617, %v616
        %v623 = vpack.c.b16 %v619, %v618
        %v629 = vsel %vm449, %v595, 0
        %631 = vmatprep.subr.bf16.mxu0 0
        %632 = vmatpush1.bf16.msra.mxu0 %v620
        %633 = vmatprep.subr.bf16.mxu0 0
        %634 = vmatpush1.bf16.msra.mxu0 %v621
        %635 = vmatprep.subr.bf16.mxu0 0
        %636 = vmatpush1.bf16.msra.mxu0 %v622
        %637 = vmatprep.subr.bf16.mxu0 0
        %638 = vmatpush1.bf16.msra.mxu0 %v623
        %639 = vmatprep.subr.bf16.mxu0 0
        %640 = vmatpush1.bf16.msra.mxu0 0
        %641 = vmatprep.subr.bf16.mxu0 0
        %642 = vmatpush1.bf16.msra.mxu0 0
        %643 = vmatprep.subr.bf16.mxu0 0
        %644 = vmatpush1.bf16.msra.mxu0 0
        %645 = vmatprep.subr.bf16.mxu0 0
        %646 = vmatpush1.bf16.msra.mxu0 0
        %647 = vmatprep.subr.bf16.mxu0 0
        %648 = vmatpush1.bf16.msra.mxu0 0
        %649 = vmatprep.subr.bf16.mxu0 0
        %650 = vmatpush1.bf16.msra.mxu0 0
        %651 = vmatprep.subr.bf16.mxu0 0
        %652 = vmatpush1.bf16.msra.mxu0 0
        %653 = vmatprep.subr.bf16.mxu0 0
        %654 = vmatpush1.bf16.msra.mxu0 0
        %655 = vmatprep.subr.bf16.mxu0 0
        %656 = vmatpush1.bf16.msra.mxu0 0
        %657 = vmatprep.subr.bf16.mxu0 0
        %658 = vmatpush1.bf16.msra.mxu0 0
        %659 = vmatprep.subr.bf16.mxu0 0
        %660 = vmatpush1.bf16.msra.mxu0 0
        %661 = vmatprep.subr.bf16.mxu0 0
        %662 = vmatpush1.bf16.msra.mxu0 0
        %663 = vmatprep.mubr.bf16.mxu0 0
        %664 = vmatmul.mubr.bf16.gmra.mrb[0].mxu0 %v629
        %v665 = vpop.f32.mrb[0].mxu0
        %v666 = vadd.f32 0.0, %v665
        %v667 = vpop.f32.mrb[0].mxu0
        %v668 = vpop.f32.mrb[0].mxu0
        %v669 = vadd.f32 0.0, %v668
        %v670 = vpop.f32.mrb[0].mxu0
        %671 = vdwg.mxu0
        %673 = vset.pattern.permute.xlu0 8
        %674 = vperm.xlu0 %673, %v347
        %v675 = vpop.permute.xlu0 %674
        %678 = vset.pattern.permute.xlu0 8
        %679 = vperm.xlu0 %678, %v348
        %v680 = vpop.permute.xlu0 %679
        %v682 = vmul.f32 %v666, %v675
        %v683 = vmul.f32 %v669, %v680
        %v684 = vlaneseq
        %v685 = vand.u32 %v684, 127
        %v686 = vld [vmem:[%s324] sm:$0xff]
        %v687 = vld [vmem:[%s324 + $0x8] sm:$0xff]
        %688 = vset.pattern.permute.xlu0 0
        %689 = vperm.xlu0 %688, %v686
        %v690 = vpop.permute.xlu0 %689
        %691 = vset.pattern.permute.xlu0 0
        %692 = vperm.xlu0 %691, %v687
        %v693 = vpop.permute.xlu0 %692
        %vm694 = vcmp.eq.s32.totalorder %v685, %v690
        %vm695 = vcmp.eq.s32.totalorder %v685, %v693
        %v696 = vsel %vm694, 1, 0
        %v697 = vsel %vm695, 1, 0
        %v698 = vcvt.s32.f32 %v696
        %v699 = vcvt.s32.f32 %v697
        %v700 = vpack.c.bf16 %v699, %v698
        %v701 = vld [vmem:[%s3] sm:$0xf]
        %v702 = vld [vmem:[%s3 + $0x4] sm:$0xf]
        %v705 = vunpack.c.l.b16 %v701
        %v706 = vunpack.c.l.b16 %v702
        %v707 = vpack.c.b16 %v706, %v705
        %vm709 = vcmask 130048
        %v711 = vsel %vm709, %v700, 0
        %713 = vmatprep.subr.bf16.mxu0 0
        %714 = vmatpush1.bf16.msra.mxu0 %v707
        %715 = vmatprep.subr.bf16.mxu0 0
        %716 = vmatpush1.bf16.msra.mxu0 0
        %717 = vmatprep.subr.bf16.mxu0 0
        %718 = vmatpush1.bf16.msra.mxu0 0
        %719 = vmatprep.subr.bf16.mxu0 0
        %720 = vmatpush1.bf16.msra.mxu0 0
        %721 = vmatprep.subr.bf16.mxu0 0
        %722 = vmatpush1.bf16.msra.mxu0 0
        %723 = vmatprep.subr.bf16.mxu0 0
        %724 = vmatpush1.bf16.msra.mxu0 0
        %725 = vmatprep.subr.bf16.mxu0 0
        %726 = vmatpush1.bf16.msra.mxu0 0
        %727 = vmatprep.subr.bf16.mxu0 0
        %728 = vmatpush1.bf16.msra.mxu0 0
        %729 = vmatprep.subr.bf16.mxu0 0
        %730 = vmatpush1.bf16.msra.mxu0 0
        %731 = vmatprep.subr.bf16.mxu0 0
        %732 = vmatpush1.bf16.msra.mxu0 0
        %733 = vmatprep.subr.bf16.mxu0 0
        %734 = vmatpush1.bf16.msra.mxu0 0
        %735 = vmatprep.subr.bf16.mxu0 0
        %736 = vmatpush1.bf16.msra.mxu0 0
        %737 = vmatprep.subr.bf16.mxu0 0
        %738 = vmatpush1.bf16.msra.mxu0 0
        %739 = vmatprep.subr.bf16.mxu0 0
        %740 = vmatpush1.bf16.msra.mxu0 0
        %741 = vmatprep.subr.bf16.mxu0 0
        %742 = vmatpush1.bf16.msra.mxu0 0
        %743 = vmatprep.subr.bf16.mxu0 0
        %744 = vmatpush1.bf16.msra.mxu0 0
        %745 = vmatprep.mubr.bf16.mxu0 0
        %746 = vmatmul.mubr.bf16.gmra.mrb[0].mxu0 %v711
        %v747 = vpop.f32.mrb[0].mxu0
        %v748 = vadd.f32 0.0, %v747
        %v749 = vpop.f32.mrb[0].mxu0
        %v750 = vpop.f32.mrb[0].mxu0
        %v751 = vadd.f32 0.0, %v750
        %v752 = vpop.f32.mrb[0].mxu0
        %753 = vdwg.mxu0
        %v754 = vmul.f32 %v748, %v682
        %v755 = vmul.f32 %v751, %v683
        %v756 = vld [vmem:[%s330] sm:$0xff]
        %v757 = vld [vmem:[%s330 + $0x8] sm:$0xff]
        %758 = vset.pattern.permute.xlu0 0
        %759 = vperm.xlu0 %758, %v756
        %v760 = vpop.permute.xlu0 %759
        %761 = vset.pattern.permute.xlu0 0
        %762 = vperm.xlu0 %761, %v757
        %v763 = vpop.permute.xlu0 %762
        %vm764 = vcmp.eq.s32.totalorder %v685, %v760
        %vm765 = vcmp.eq.s32.totalorder %v685, %v763
        %v766 = vsel %vm764, 1, 0
        %v767 = vsel %vm765, 1, 0
        %v768 = vcvt.s32.f32 %v766
        %v769 = vcvt.s32.f32 %v767
        %v770 = vld [vmem:[#allocation2] sm:$0xff]
        %v771 = vld [vmem:[#allocation2 + $0x8] sm:$0xff]
        %772 = vxpose.xlu0.b32.start [1/16] %v768, 128
        %773 = vxpose.xlu0.b32.cont [2/16] %v769, 128
        %774 = vxpose.xlu0.b32.cont [3/16] 0.0, 128
        %775 = vxpose.xlu0.b32.cont [4/16] 0.0, 128
        %776 = vxpose.xlu0.b32.cont [5/16] 0.0, 128
        %777 = vxpose.xlu0.b32.cont [6/16] 0.0, 128
        %778 = vxpose.xlu0.b32.cont [7/16] 0.0, 128
        %779 = vxpose.xlu0.b32.cont [8/16] 0.0, 128
        %780 = vxpose.xlu0.b32.cont [9/16] 0.0, 128
        %781 = vxpose.xlu0.b32.cont [10/16] 0.0, 128
        %782 = vxpose.xlu0.b32.cont [11/16] 0.0, 128
        %783 = vxpose.xlu0.b32.cont [12/16] 0.0, 128
        %784 = vxpose.xlu0.b32.cont [13/16] 0.0, 128
        %785 = vxpose.xlu0.b32.cont [14/16] 0.0, 128
        %786 = vxpose.xlu0.b32.cont [15/16] 0.0, 128
        %787 = vxpose.xlu0.b32.end [16/16] 0.0, 128
        %v788 = vpop.trf.xlu0
        %v789 = vpop.trf.xlu0
        %v790 = vpop.trf.xlu0
        %v791 = vpop.trf.xlu0
        %v792 = vpop.trf.xlu0
        %v793 = vpop.trf.xlu0
        %v794 = vpop.trf.xlu0
        %v795 = vpop.trf.xlu0
        %v796 = vpop.trf.xlu0
        %v797 = vpop.trf.xlu0
        %v798 = vpop.trf.xlu0
        %v799 = vpop.trf.xlu0
        %v800 = vpop.trf.xlu0
        %v801 = vpop.trf.xlu0
        %v802 = vpop.trf.xlu0
        %v803 = vpop.trf.xlu0
        %v805 = vsel %vm709, %v788, 0
        %v808 = vsel %vm709, %v789, 0
        %810 = vmatprep.subr.mxu0 0.0
        %811 = vmatpush1.msra.mxu0 %v754
        %812 = vmatprep.subr.mxu0 0.0
        %813 = vmatpush1.msra.mxu0 %v755
        %814 = vmatprep.subr.mxu0 0.0
        %815 = vmatpush1.msra.mxu0 0.0
        %816 = vmatprep.subr.mxu0 0.0
        %817 = vmatpush1.msra.mxu0 0.0
        %818 = vmatprep.subr.mxu0 0.0
        %819 = vmatpush1.msra.mxu0 0.0
        %820 = vmatprep.subr.mxu0 0.0
        %821 = vmatpush1.msra.mxu0 0.0
        %822 = vmatprep.subr.mxu0 0.0
        %823 = vmatpush1.msra.mxu0 0.0
        %824 = vmatprep.subr.mxu0 0.0
        %825 = vmatpush1.msra.mxu0 0.0
        %826 = vmatprep.subr.mxu0 0.0
        %827 = vmatpush1.msra.mxu0 0.0
        %828 = vmatprep.subr.mxu0 0.0
        %829 = vmatpush1.msra.mxu0 0.0
        %830 = vmatprep.subr.mxu0 0.0
        %831 = vmatpush1.msra.mxu0 0.0
        %832 = vmatprep.subr.mxu0 0.0
        %833 = vmatpush1.msra.mxu0 0.0
        %834 = vmatprep.subr.mxu0 0.0
        %835 = vmatpush1.msra.mxu0 0.0
        %836 = vmatprep.subr.mxu0 0.0
        %837 = vmatpush1.msra.mxu0 0.0
        %838 = vmatprep.subr.mxu0 0.0
        %839 = vmatpush1.msra.mxu0 0.0
        %840 = vmatprep.subr.mxu0 0.0
        %841 = vmatpush1.msra.mxu0 0.0
        %842 = vmatprep.subr.mxu0 0.0
        %843 = vmatpush1.msra.mxu0 0.0
        %844 = vmatprep.subr.mxu0 0.0
        %845 = vmatpush1.msra.mxu0 0.0
        %846 = vmatprep.subr.mxu0 0.0
        %847 = vmatpush1.msra.mxu0 0.0
        %848 = vmatprep.subr.mxu0 0.0
        %849 = vmatpush1.msra.mxu0 0.0
        %850 = vmatprep.subr.mxu0 0.0
        %851 = vmatpush1.msra.mxu0 0.0
        %852 = vmatprep.subr.mxu0 0.0
        %853 = vmatpush1.msra.mxu0 0.0
        %854 = vmatprep.subr.mxu0 0.0
        %855 = vmatpush1.msra.mxu0 0.0
        %856 = vmatprep.subr.mxu0 0.0
        %857 = vmatpush1.msra.mxu0 0.0
        %858 = vmatprep.subr.mxu0 0.0
        %859 = vmatpush1.msra.mxu0 0.0
        %860 = vmatprep.subr.mxu0 0.0
        %861 = vmatpush1.msra.mxu0 0.0
        %862 = vmatprep.subr.mxu0 0.0
        %863 = vmatpush1.msra.mxu0 0.0
        %864 = vmatprep.subr.mxu0 0.0
        %865 = vmatpush1.msra.mxu0 0.0
        %866 = vmatprep.subr.mxu0 0.0
        %867 = vmatpush1.msra.mxu0 0.0
        %868 = vmatprep.subr.mxu0 0.0
        %869 = vmatpush1.msra.mxu0 0.0
        %870 = vmatprep.subr.mxu0 0.0
        %871 = vmatpush1.msra.mxu0 0.0
        %872 = vmatprep.subr.mxu0 0.0
        %873 = vmatpush1.msra.mxu0 0.0
        %874 = vmatprep.mubr.f32.mxu0 0.0
        %875 = vmatmul.mubr.f32.gmra.mrb[0].mxu0 %v805
        %v876 = vpop.f32.mrb[0].mxu0
        %v877 = vadd.f32 0.0, %v876
        %v878 = vpop.f32.mrb[0].mxu0
        %879 = vmatprep.mubr.f32.mxu0 0.0
        %880 = vmatmul.mubr.f32.gmra.mrb[0].mxu0 %v808
        %v881 = vpop.f32.mrb[0].mxu0
        %v882 = vadd.f32 0.0, %v881
        %v883 = vpop.f32.mrb[0].mxu0
        %884 = vdwg.mxu0
        %v885 = vadd.f32 %v770, %v877
        %v886 = vadd.f32 %v771, %v882
        %887 = vst [vmem:[#allocation2] sm:$0xff] %v885
        %888 = vst [vmem:[#allocation2 + $0x8] sm:$0xff] %v886
        // Predicated region
        $region57: #{tpu_custom_call.1} parent=51 // pred_check
          %p889 = pneg %p216
        $region58: #{tpu_custom_call.1} parent=51 // pred_check_branch
          %891 = sbr.rel (%p889) target = $region60
        $region59: #{tpu_custom_call.1} parent=51 // pred_region
          %s893 = ssub.s32 256, 256
          %894 = vsyncadd [#allocation3], %s893
          %s895 = sshll.u32 [#allocation2], 4
          %s896 = int_to_ptr.vmem [resolvable:$true] %s895
          %901 = dma.vmem_to_hbm [thread:$0]  %s896, 256, %s8, [#allocation3], 128, 128, 8
        $region60: #{tpu_custom_call.1} parent=51 // pred_fallthru
          _
        // Predicated region
        $region61: #{tpu_custom_call.1} parent=51 // pred_check
          %p902 = pneg %p216
        $region62: #{tpu_custom_call.1} parent=51 // pred_check_branch
          %904 = sbr.rel (%p902) target = $region64
        $region63: #{tpu_custom_call.1} parent=51 // pred_region
          %905 = dma.done [#allocation3], 256
        $region64: #{tpu_custom_call.1} parent=51 // pred_fallthru
          _
      $region52: #{tpu_custom_call.1} parent=5 // pred_fallthru
        _
      %p906 = scmp.le.s32.totalorder 2, %s15
      // Predicated region
      $region65: #{tpu_custom_call.1} parent=5 // pred_check
        %p907 = pneg %p906
      $region66: #{tpu_custom_call.1} parent=5 // pred_check_branch
        %909 = sbr.rel (%p907) target = $region68
      $region67: #{tpu_custom_call.1} parent=5 // pred_region
        %s910 = ssub.s32 %s15, 2
      $region68: #{tpu_custom_call.1} parent=5 // pred_fallthru
        _
    $region6: #{tpu_custom_call.1} parent=1 // loop_footer
      %s19 = sadd.s32 1, %s15
    $region7: #{tpu_custom_call.1} parent=1 // loop_footer_branch
      %14 = sbr.rel target = $region3
    $region8: #{tpu_custom_call.1} parent=1 // loop_exit
      _
    %911 = vsyncpa [#allocation3], 1
    %s912 = scalar_lea.sflag [#allocation3], 1
    %913 = vsyncpa %s912, 1

</llo_original>
